<compile_context>
chip_gen: v6e
topology: v6e:2x2x1
jax: 0.10.0
libtpu: 0.0.40
codegen_flags: <defaults>
</compile_context>

<pallas_src>
import jax
import jax.numpy as jnp
from jax.experimental import pallas as pl
from jax.experimental.pallas import tpu as pltpu


def _round_up(a: int, b: int) -> int:
    return ((a + b - 1) // b) * b


def _tile_options(total: int, unit: int, cap: int):
    """Multiples of `unit` that evenly divide `total`, descending, <= cap."""
    q = total // unit
    opts = [d * unit for d in range(q, 0, -1) if q % d == 0 and d * unit <= cap]
    if not opts:
        opts = [unit]
    return opts


def _vmem_budget_bytes() -> int:
    """Scoped-VMEM budget: ~3/4 of physical VMEM (128 MiB on v5e/v6e, 64 MiB per
    TensorCore on v7x), capped at 96 MiB, conservative fallback if the hardware
    query is unavailable."""
    try:
        phys = int(pltpu.get_tpu_info().vmem_capacity_bytes)
    except Exception:
        phys = 64 * 1024 * 1024
    return min((phys * 3) // 4, 96 * 1024 * 1024)


def _working_set_bytes(tm, tn, tk, in_item, out_item, use_scratch):
    b = 2 * (tm * tk + tk * tn) * in_item   # double-buffered x and weight tiles
    b += 2 * 8 * tn * 4                     # (2, tn) scale/shift, sublane-padded
    b += 2 * tm * tn * out_item             # resident / double-buffered output tile
    if use_scratch:
        b += tm * tn * 4                    # f32 accumulator scratch
    return b


# ----------------------------------------------------------------------------- #
# Kernels
# ----------------------------------------------------------------------------- #
def _linear_affine_kernel_accum_out(x_ref, w_ref, ss_ref, o_ref):
    """f32 output: accumulate directly into the resident output tile (no scratch)."""
    k = pl.program_id(2)
    prod = jnp.dot(x_ref[...], w_ref[...], preferred_element_type=jnp.float32)

    @pl.when(k == 0)
    def _():
        o_ref[...] = prod

    @pl.when(k != 0)
    def _():
        o_ref[...] += prod

    @pl.when(k == pl.num_programs(2) - 1)
    def _():
        ss = ss_ref[...]
        # Fused per-feature affine: folded (linear bias + eval-mode BatchNorm1d).
        o_ref[...] = o_ref[...] * ss[0:1, :] + ss[1:2, :]


def _linear_affine_kernel_scratch(x_ref, w_ref, ss_ref, o_ref, acc_ref):
    """Non-f32 output: f32 VMEM accumulator, cast once in the epilogue."""
    k = pl.program_id(2)
    prod = jnp.dot(x_ref[...], w_ref[...], preferred_element_type=jnp.float32)

    @pl.when(k == 0)
    def _():
        acc_ref[...] = prod

    @pl.when(k != 0)
    def _():
        acc_ref[...] += prod

    @pl.when(k == pl.num_programs(2) - 1)
    def _():
        ss = ss_ref[...]
        o_ref[...] = (acc_ref[...] * ss[0:1, :] + ss[1:2, :]).astype(o_ref.dtype)


# ----------------------------------------------------------------------------- #
# Parameter preparation (run ONCE per layer)
# ----------------------------------------------------------------------------- #
def prepare_linear_layer_params(weight_t, bias, bn_scale, bn_shift, *,
                                compute_dtype=jnp.bfloat16):
    """Pad/cast the weight and pack the affine vectors once, ahead of time.

    weight_t: (in_features, out_features); bias/bn_scale/bn_shift: (out_features,).
    compute_dtype: MXU input dtype for the weight/activation stream (bf16 default,
    which halves the HBM-bound weight stream); accumulation and the affine
    epilogue always stay in float32.
    """
    K, N = weight_t.shape
    Kp = _round_up(K, 128)
    Np = _round_up(N, 128)
    cdtype = jnp.dtype(compute_dtype)

    if (Kp, Np) == (K, N):
        wp = weight_t.astype(cdtype)
    else:
        wp = jnp.zeros((Kp, Np), cdtype).at[:K, :N].set(weight_t.astype(cdtype))

    # Fold the linear bias into the BN shift:  (x@W + b)*s + t == (x@W)*s + (b*s+t)
    scale = bn_scale.astype(jnp.float32)
    shift = bias.astype(jnp.float32) * scale + bn_shift.astype(jnp.float32)
    ss = jnp.zeros((2, Np), jnp.float32)
    ss = ss.at[0, :N].set(scale).at[1, :N].set(shift)

    return {
        "weight": wp,                # (Kp, Np), compute_dtype
        "scale_shift": ss,           # (2, Np), f32   [row 0 = scale, row 1 = shift]
        "in_features": K,
        "out_features": N,
        "Kp": Kp,
        "Np": Np,
        "compute_dtype": cdtype,
    }


# ----------------------------------------------------------------------------- #
# Forward wrapper (per call)
# ----------------------------------------------------------------------------- #
def linear_layer_forward(x, params, *, tm_cap=1024, tn_cap=512, tk_cap=None):
    """x: (B, in_features) -> (B, out_features), dtype of x."""
    B, K = x.shape
    assert K == params["in_features"], "in_features mismatch"
    N, Kp, Np = params["out_features"], params["Kp"], params["Np"]
    cdtype = params["compute_dtype"]

    in_item = cdtype.itemsize
    out_dtype = x.dtype
    out_item = jnp.dtype(out_dtype).itemsize
    use_scratch = jnp.dtype(out_dtype) != jnp.dtype(jnp.float32)

    # Packed-sublane minimum for the x block's sublane (M) dim: 8 f32, 16 bf16.
    sub_min = max(8, 32 // in_item)
    Mp_base = _round_up(B, sub_min)

    budget = _vmem_budget_bytes()
    if tk_cap is None:
        tk_cap = 2048 if budget >= 64 * 1024 * 1024 else 1024

    # tm candidates: whole padded batch first, then halves.  M over-padding is
    # cheap (it only grows the small x / output streams, never the weight), and
    # keeping tm == Mp means the K x N weight is streamed from HBM exactly once.
    tm_opts = []
    t = _round_up(min(tm_cap, Mp_base), sub_min)
    while True:
        tm_opts.append(t)
        if t <= sub_min:
            break
        t = max(sub_min, _round_up(t // 2, sub_min))

    # tn / tk must divide the (fixed, prepared) padded weight dims exactly.
    tn_opts = _tile_options(Np, 128, min(tn_cap, Np))
    tk_opts = _tile_options(Kp, 128, min(tk_cap, Kp))

    im = i_n = ik = 0
    usable = int(budget * 0.8)
    while _working_set_bytes(tm_opts[im], tn_opts[i_n], tk_opts[ik],
                             in_item, out_item, use_scratch) > usable:
        # Shrink K first (no extra HBM traffic), then N (re-streams only the
        # small x), and M (re-streams the weight) only as a last resort.
        if ik + 1 < len(tk_opts):
            ik += 1
        elif i_n + 1 < len(tn_opts):
            i_n += 1
        elif im + 1 < len(tm_opts):
            im += 1
        else:
            break
    tm, tn, tk = tm_opts[im], tn_opts[i_n], tk_opts[ik]
    Mp = _round_up(B, tm)

    # v7x megacore: make sure the "parallel" part of the grid has >= 2 tiles so
    # both TensorCores get work.  Split along N (only the small x is re-streamed,
    # never the weight); essentially free on single-TC v5e/v6e.
    if (Mp // tm) * (Np // tn) < 2:
        smaller_n = [s for s in _tile_options(Np, 128, Np) if s < tn]
        if smaller_n:
            tn = smaller_n[0]
        # TODO(synk): when Np == 128 and the batch fits one tile, occupying v7x's
        # second TensorCore would need a K-split with a cross-core reduction.

    # Pad/cast x only when actually needed (and slice the output only if padded).
    if (Mp, Kp) != (B, K):
        xp = jnp.zeros((Mp, Kp), cdtype).at[:B, :K].set(x.astype(cdtype))
    elif jnp.dtype(cdtype) != x.dtype:
        xp = x.astype(cdtype)
    else:
        xp = x

    grid = (Mp // tm, Np // tn, Kp // tk)

    kernel = _linear_affine_kernel_scratch if use_scratch else _linear_affine_kernel_accum_out
    scratch = (pltpu.VMEM((tm, tn), jnp.float32),) if use_scratch else ()

    cost = pl.CostEstimate(
        flops=2 * Mp * Kp * Np,
        transcendentals=0,
        bytes_accessed=(Mp * Kp * in_item          # x stream
                        + Kp * Np * in_item        # weight stream (read once)
                        + Mp * Np * out_item       # output stream
                        + 2 * Np * 4),             # packed scale/shift
    )

    out_padded = pl.pallas_call(
        kernel,
        out_shape=jax.ShapeDtypeStruct((Mp, Np), out_dtype),
        grid_spec=pltpu.PrefetchScalarGridSpec(
            num_scalar_prefetch=0,
            grid=grid,
            in_specs=[
                pl.BlockSpec((tm, tk), lambda i, j, k: (i, k)),
                # NOTE: if the weight DMA is still exposed on v7x after the larger
                # tk, pipeline_mode=pl.Buffered(3) on this spec is the next knob.
                pl.BlockSpec((tk, tn), lambda i, j, k: (k, j)),
                # Packed (scale, shift): one (2, tn) block, resident across K.
                pl.BlockSpec((2, tn), lambda i, j, k: (0, j)),
            ],
            out_specs=pl.BlockSpec((tm, tn), lambda i, j, k: (i, j)),
            scratch_shapes=scratch,
        ),
        compiler_params=pltpu.CompilerParams(
            dimension_semantics=("parallel", "parallel", "arbitrary"),
            vmem_limit_bytes=int(budget),
        ),
        cost_estimate=cost,
    )(xp, params["weight"], params["scale_shift"])

    if (Mp, Np) != (B, N):
        return out_padded[:B, :N]
    return out_padded


# ----------------------------------------------------------------------------- #
# Synthetic parameters mirroring LinearLayer.__init__ (+ f32 reference)
# ----------------------------------------------------------------------------- #
def make_linear_layer_params(key, in_features, out_features,
                             use_bias=True, use_bn=False):
    kw, kb, kg, kbt, km, kv = jax.random.split(key, 6)
    bound = 1.0 / jnp.sqrt(in_features)
    # PyTorch stores weight as (out, in); we keep the transposed (in, out) layout.
    w_t = jax.random.uniform(kw, (in_features, out_features),
                             minval=-bound, maxval=bound, dtype=jnp.float32)

    has_linear_bias = use_bias and (not use_bn)
    if has_linear_bias:
        bias = jax.random.uniform(kb, (out_features,),
                                  minval=-bound, maxval=bound, dtype=jnp.float32)
    else:
        bias = jnp.zeros((out_features,), jnp.float32)

    if use_bn:
        eps = 1e-5
        gamma = 1.0 + 0.1 * jax.random.normal(kg, (out_features,), jnp.float32)
        beta = 0.1 * jax.random.normal(kbt, (out_features,), jnp.float32)
        running_mean = 0.1 * jax.random.normal(km, (out_features,), jnp.float32)
        running_var = jnp.abs(1.0 + 0.1 * jax.random.normal(kv, (out_features,),
                                                            jnp.float32))
        bn_scale = gamma * jax.lax.rsqrt(running_var + eps)
        bn_shift = beta - running_mean * bn_scale
    else:
        bn_scale = jnp.ones((out_features,), jnp.float32)
        bn_shift = jnp.zeros((out_features,), jnp.float32)

    return w_t, bias, bn_scale, bn_shift


def _reference(x, w_t, bias, bn_scale, bn_shift):
    y = x @ w_t + bias[None, :]
    return y * bn_scale[None, :] + bn_shift[None, :]


if __name__ == "__main__":
    key = jax.random.PRNGKey(0)
    (k1, k3, k4, k5, kp1, kp2, kp3, kp4, kp5) = jax.random.split(key, 9)

    # Case 1: plain Linear with bias (use_bn=False), exact f32 stream.
    B, IN, OUT = 8, 32, 64
    x = jax.random.normal(k1, (B, IN), jnp.float32)
    raw1 = make_linear_layer_params(kp1, IN, OUT, use_bias=True, use_bn=False)
    prep1 = prepare_linear_layer_params(*raw1, compute_dtype=jnp.float32)
    out1 = jax.block_until_ready(linear_layer_forward(x, prep1))
    ref1 = _reference(x, *raw1)
    assert out1.shape == (B, OUT) and out1.dtype == jnp.float32
    assert jnp.allclose(out1, ref1, atol=2e-3, rtol=2e-3)

    # Case 2: Linear (no bias) + eval-mode BatchNorm1d, exact f32 stream.
    raw2 = make_linear_layer_params(kp2, IN, OUT, use_bias=True, use_bn=True)
    prep2 = prepare_linear_layer_params(*raw2, compute_dtype=jnp.float32)
    out2 = jax.block_until_ready(linear_layer_forward(x, prep2))
    ref2 = _reference(x, *raw2)
    assert out2.shape == (B, OUT)
    assert jnp.allclose(out2, ref2, atol=2e-3, rtol=2e-3)

    # Case 3: unaligned B / OUT (M & N padding + output slice), multiple K steps
    # (tk_cap forces a 2-step reduction) and multiple N tiles; f32, use_bn=True.
    B3, IN3, OUT3 = 60, 512, 200
    x3 = jax.random.normal(k3, (B3, IN3), jnp.float32)
    raw3 = make_linear_layer_params(kp3, IN3, OUT3, use_bias=True, use_bn=True)
    prep3 = prepare_linear_layer_params(*raw3, compute_dtype=jnp.float32)
    out3 = jax.block_until_ready(linear_layer_forward(x3, prep3, tk_cap=256))
    ref3 = _reference(x3, *raw3)
    assert out3.shape == (B3, OUT3)
    assert jnp.allclose(out3, ref3, atol=2e-3, rtol=2e-3)

    # Case 4: default bf16 weight/activation stream (f32 accumulation + f32
    # epilogue, f32 output), larger layer, use_bn=True.
    B4, IN4, OUT4 = 64, 1024, 384
    x4 = jax.random.normal(k4, (B4, IN4), jnp.float32)
    raw4 = make_linear_layer_params(kp4, IN4, OUT4, use_bias=True, use_bn=True)
    prep4 = prepare_linear_layer_params(*raw4)            # bf16 stream by default
    out4 = jax.block_until_ready(linear_layer_forward(x4, prep4))
    w4, b4, s4, t4 = raw4
    ref4 = _reference(x4.astype(jnp.bfloat16).astype(jnp.float32),
                      w4.astype(jnp.bfloat16).astype(jnp.float32), b4, s4, t4)
    assert out4.shape == (B4, OUT4) and out4.dtype == jnp.float32
    assert jnp.allclose(out4, ref4, atol=2e-2, rtol=2e-2)

    # Case 5: bf16 input AND bf16 output (exercises the scratch-accumulator path).
    B5, IN5, OUT5 = 32, 256, 256
    x5 = jax.random.normal(k5, (B5, IN5), jnp.float32).astype(jnp.bfloat16)
    raw5 = make_linear_layer_params(kp5, IN5, OUT5, use_bias=True, use_bn=True)
    prep5 = prepare_linear_layer_params(*raw5)            # bf16 stream by default
    out5 = jax.block_until_ready(linear_layer_forward(x5, prep5))
    ref5 = _reference(x5.astype(jnp.float32),
                      raw5[0].astype(jnp.bfloat16).astype(jnp.float32),
                      raw5[1], raw5[2], raw5[3])
    assert out5.shape == (B5, OUT5) and out5.dtype == jnp.bfloat16
    assert jnp.allclose(out5.astype(jnp.float32), ref5, atol=3e-2, rtol=3e-2)

    print("KERNEL_OK")
</pallas_src>

<mosaic_0001>
module attributes {stable_mosaic.version = 11 : i64} {
  func.func @_linear_affine_kernel_accum_out(%arg0: i32, %arg1: i32, %arg2: i32, %arg3: memref<8x128xf32, #tpu.memory_space<vmem>>, %arg4: memref<128x128xf32, #tpu.memory_space<vmem>>, %arg5: memref<2x128xf32, #tpu.memory_space<vmem>>, %arg6: memref<8x128xf32, #tpu.memory_space<vmem>>) attributes {dimension_semantics = [#tpu.dimension_semantics<parallel>, #tpu.dimension_semantics<parallel>, #tpu.dimension_semantics<arbitrary>], iteration_bounds = array<i64: 1, 1, 1>, scalar_prefetch = 0 : i64, scratch_operands = 0 : i64, tpu.core_type = #tpu.core_type<tc>, window_params = [{transform_indices = @transform_0, window_bounds = array<i64: 8, 128>}, {transform_indices = @transform_1, window_bounds = array<i64: 128, 128>}, {transform_indices = @transform_2, window_bounds = array<i64: 2, 128>}, {transform_indices = @transform_3, window_bounds = array<i64: 8, 128>}]} {
    %c0 = arith.constant 0 : index
    %c0_0 = arith.constant 0 : index
    %0 = vector.load %arg3[%c0, %c0_0] : memref<8x128xf32, #tpu.memory_space<vmem>>, vector<8x128xf32>
    %c0_1 = arith.constant 0 : index
    %c0_2 = arith.constant 0 : index
    %1 = vector.load %arg4[%c0_1, %c0_2] : memref<128x128xf32, #tpu.memory_space<vmem>>, vector<128x128xf32>
    %cst = arith.constant dense<0.000000e+00> : vector<8x128xf32>
    %2 = tpu.matmul %0, %1, %cst {dimension_numbers = #tpu.dot_dimension_numbers<[1], [0], [0], [1], [0, 0, 1, 1], [], []>} : vector<8x128xf32>, vector<128x128xf32>, vector<8x128xf32> -> vector<8x128xf32>
    %c0_i32 = arith.constant 0 : i32
    %3 = arith.cmpi eq, %arg2, %c0_i32 : i32
    %4 = arith.extui %3 : i1 to i32
    %c0_i32_3 = arith.constant 0 : i32
    %5 = arith.cmpi ne, %4, %c0_i32_3 : i32
    scf.if %5 {
      %c0_8 = arith.constant 0 : index
      %c0_9 = arith.constant 0 : index
      %12 = vector.load %arg6[%c0_8, %c0_9] : memref<8x128xf32, #tpu.memory_space<vmem>>, vector<8x128xf32>
      tpu.vector_store %arg6[%c0_8, %c0_9], %2 {strides = array<i32>} : memref<8x128xf32, #tpu.memory_space<vmem>>, vector<8x128xf32>,
    } else {
    }
    %c0_i32_4 = arith.constant 0 : i32
    %6 = arith.cmpi ne, %arg2, %c0_i32_4 : i32
    %7 = arith.extui %6 : i1 to i32
    %c0_i32_5 = arith.constant 0 : i32
    %8 = arith.cmpi ne, %7, %c0_i32_5 : i32
    scf.if %8 {
      %c0_8 = arith.constant 0 : index
      %c0_9 = arith.constant 0 : index
      %12 = vector.load %arg6[%c0_8, %c0_9] : memref<8x128xf32, #tpu.memory_space<vmem>>, vector<8x128xf32>
      %13 = arith.addf %12, %2 : vector<8x128xf32>
      %c0_10 = arith.constant 0 : index
      %c0_11 = arith.constant 0 : index
      %14 = vector.load %arg6[%c0_10, %c0_11] : memref<8x128xf32, #tpu.memory_space<vmem>>, vector<8x128xf32>
      tpu.vector_store %arg6[%c0_10, %c0_11], %13 {strides = array<i32>} : memref<8x128xf32, #tpu.memory_space<vmem>>, vector<8x128xf32>,
    } else {
    }
    %c0_i32_6 = arith.constant 0 : i32
    %9 = arith.cmpi eq, %arg2, %c0_i32_6 : i32
    %10 = arith.extui %9 : i1 to i32
    %c0_i32_7 = arith.constant 0 : i32
    %11 = arith.cmpi ne, %10, %c0_i32_7 : i32
    scf.if %11 {
      %c0_8 = arith.constant 0 : index
      %c0_9 = arith.constant 0 : index
      %12 = vector.load %arg5[%c0_8, %c0_9] : memref<2x128xf32, #tpu.memory_space<vmem>>, vector<2x128xf32>
      %c0_10 = arith.constant 0 : index
      %c0_11 = arith.constant 0 : index
      %13 = vector.load %arg6[%c0_10, %c0_11] : memref<8x128xf32, #tpu.memory_space<vmem>>, vector<8x128xf32>
      %14 = vector.extract_strided_slice %12 {offsets = [0, 0], sizes = [1, 128], strides = [1, 1]} : vector<2x128xf32> to vector<1x128xf32>
      %15 = vector.broadcast %14 : vector<1x128xf32> to vector<8x128xf32>
      %16 = arith.mulf %13, %15 : vector<8x128xf32>
      %17 = vector.extract_strided_slice %12 {offsets = [1, 0], sizes = [1, 128], strides = [1, 1]} : vector<2x128xf32> to vector<1x128xf32>
      %18 = vector.broadcast %17 : vector<1x128xf32> to vector<8x128xf32>
      %19 = arith.addf %16, %18 : vector<8x128xf32>
      %c0_12 = arith.constant 0 : index
      %c0_13 = arith.constant 0 : index
      %20 = vector.load %arg6[%c0_12, %c0_13] : memref<8x128xf32, #tpu.memory_space<vmem>>, vector<8x128xf32>
      tpu.vector_store %arg6[%c0_12, %c0_13], %19 {strides = array<i32>} : memref<8x128xf32, #tpu.memory_space<vmem>>, vector<8x128xf32>,
    } else {
    }
    return
  }
  func.func @transform_0(%arg0: i32, %arg1: i32, %arg2: i32) -> (i32, i32) {
    %c0_i32 = arith.constant 0 : i32
    return %arg0, %arg2 : i32, i32
  }
  func.func @transform_1(%arg0: i32, %arg1: i32, %arg2: i32) -> (i32, i32) {
    %c0_i32 = arith.constant 0 : i32
    return %arg2, %arg1 : i32, i32
  }
  func.func @transform_2(%arg0: i32, %arg1: i32, %arg2: i32) -> (i32, i32) {
    %c0_i32 = arith.constant 0 : i32
    %c0_i32_0 = arith.constant 0 : i32
    return %c0_i32, %arg1 : i32, i32
  }
  func.func @transform_3(%arg0: i32, %arg1: i32, %arg2: i32) -> (i32, i32) {
    %c0_i32 = arith.constant 0 : i32
    return %arg0, %arg1 : i32, i32
  }
}

</mosaic_0001>

<llo_original>
// kernel: tpu_custom_call.1
$region0: #{tpu_custom_call.1}
  #allocation0 [shape = 'u32[]', space=smem, size = 0x4, offset = 0x4, fixed_abs, tag = 'smem constant byte address 0x4 - core index']
  #allocation1 [shape = 'u32[144,128]{1,0:T(1,128)}', space=vmem, size = 0x12000, scoped, tag = 'internal scratch']
  %s0 = inlined_call_operand.hbm [shape: f32[8,128], index: 0, kind: input, shape index: {}]
  %s1 = inlined_call_operand.hbm [shape: f32[128,128], index: 1, kind: input, shape index: {}]
  %s2 = inlined_call_operand.vmem [shape: f32[2,128], index: 2, kind: input, shape index: {}]
  %s3 = inlined_call_operand.hbm [shape: f32[8,128], index: 3, kind: output, shape index: {}]
  %s4 = sld [smem:[#allocation0]]
  $region42: #{tpu_custom_call.1} parent=0
    _
  %s6 = ssub.s32 1, %s4
  %s7 = scalar_select 0, %s6, %s4
  $region1: #{tpu_custom_call.1} parent=0
    #allocation2 [shape = 'u8[4096]{0}', space=vmem, size = 0x1000, scoped, tag = 'input window, operand 0, single buffered']
    #allocation3 [shape = 's32[1]{0}', space=sflag, size = 0x4, scoped, tag = 'scoped memory for tpu_custom_call.1']
    #allocation4 [shape = 's32[1]{0}', space=sflag, size = 0x4, scoped, tag = 'scoped memory for tpu_custom_call.1']
    #allocation5 [shape = 'u8[65536]{0}', space=vmem, size = 0x10000, scoped, tag = 'input window, operand 1, single buffered']
    #allocation6 [shape = 's32[1]{0}', space=sflag, size = 0x4, scoped, tag = 'scoped memory for tpu_custom_call.1']
    #allocation7 [shape = 'u8[4096]{0}', space=vmem, size = 0x1000, scoped, tag = 'output window, operand 0, single buffered']
    %8 = vsyncpa [#allocation3], 0
    %9 = vsyncpa [#allocation6], 0
    %10 = vsyncpa [#allocation4], 0
    // Predicated region
    $region2: #{tpu_custom_call.1} parent=1 // pred_check
      _
    $region3: #{tpu_custom_call.1} parent=1 // pred_check_branch
      %12 = sbr.rel (0) target = $region5
    $region4: #{tpu_custom_call.1} parent=1 // pred_region
      %s14 = ssub.s32 128, 128
      %15 = vsyncadd [#allocation3], %s14
      %s17 = sshll.u32 [#allocation2], 4
      %s18 = int_to_ptr.vmem [resolvable:$true] %s17
      %20 = dma.hbm_to_vmem [thread:$0]  %s0, 128, %s18, [#allocation3]
    $region5: #{tpu_custom_call.1} parent=1 // pred_fallthru
      _
    // Predicated region
    $region6: #{tpu_custom_call.1} parent=1 // pred_check
      _
    $region7: #{tpu_custom_call.1} parent=1 // pred_check_branch
      %22 = sbr.rel (0) target = $region9
    $region8: #{tpu_custom_call.1} parent=1 // pred_region
      %s24 = ssub.s32 2048, 2048
      %25 = vsyncadd [#allocation6], %s24
      %s26 = sshll.u32 [#allocation5], 4
      %s27 = int_to_ptr.vmem [resolvable:$true] %s26
      %32 = dma.hbm_to_vmem [thread:$0]  %s1, 2048, %s27, [#allocation6], 128, 128, 8
    $region9: #{tpu_custom_call.1} parent=1 // pred_fallthru
      _
    // Predicated region
    $region10: #{tpu_custom_call.1} parent=1 // pred_check
      _
    $region11: #{tpu_custom_call.1} parent=1 // pred_check_branch
      %34 = sbr.rel (0) target = $region13
    $region12: #{tpu_custom_call.1} parent=1 // pred_region
      _
    $region13: #{tpu_custom_call.1} parent=1 // pred_fallthru
      _
    // Predicated region
    $region14: #{tpu_custom_call.1} parent=1 // pred_check
      _
    $region15: #{tpu_custom_call.1} parent=1 // pred_check_branch
      %36 = sbr.rel (0) target = $region17
    $region16: #{tpu_custom_call.1} parent=1 // pred_region
      %37 = dma.done [#allocation3], 128
    $region17: #{tpu_custom_call.1} parent=1 // pred_fallthru
      _
    // Predicated region
    $region18: #{tpu_custom_call.1} parent=1 // pred_check
      _
    $region19: #{tpu_custom_call.1} parent=1 // pred_check_branch
      %39 = sbr.rel (0) target = $region21
    $region20: #{tpu_custom_call.1} parent=1 // pred_region
      %40 = dma.done [#allocation6], 2048
    $region21: #{tpu_custom_call.1} parent=1 // pred_fallthru
      _
    %v41 = vld [vmem:[#allocation2] sm:$0xff]
    %v42 = vld [vmem:[#allocation5] sm:$0xff]
    %v43 = vld [vmem:[#allocation5 + $0x8] sm:$0xff]
    %v44 = vld [vmem:[#allocation5 + $0x10] sm:$0xff]
    %v45 = vld [vmem:[#allocation5 + $0x18] sm:$0xff]
    %v46 = vld [vmem:[#allocation5 + $0x20] sm:$0xff]
    %v47 = vld [vmem:[#allocation5 + $0x28] sm:$0xff]
    %v48 = vld [vmem:[#allocation5 + $0x30] sm:$0xff]
    %v49 = vld [vmem:[#allocation5 + $0x38] sm:$0xff]
    %v50 = vld [vmem:[#allocation5 + $0x40] sm:$0xff]
    %v51 = vld [vmem:[#allocation5 + $0x48] sm:$0xff]
    %v52 = vld [vmem:[#allocation5 + $0x50] sm:$0xff]
    %v53 = vld [vmem:[#allocation5 + $0x58] sm:$0xff]
    %v54 = vld [vmem:[#allocation5 + $0x60] sm:$0xff]
    %v55 = vld [vmem:[#allocation5 + $0x68] sm:$0xff]
    %v56 = vld [vmem:[#allocation5 + $0x70] sm:$0xff]
    %v57 = vld [vmem:[#allocation5 + $0x78] sm:$0xff]
    %58 = vmatprep.subr.mxu0 0.0
    %59 = vmatpush1.msra.mxu0 %v57
    %60 = vmatprep.subr.mxu0 0.0
    %61 = vmatpush1.msra.mxu0 %v56
    %62 = vmatprep.subr.mxu0 0.0
    %63 = vmatpush1.msra.mxu0 %v55
    %64 = vmatprep.subr.mxu0 0.0
    %65 = vmatpush1.msra.mxu0 %v54
    %66 = vmatprep.subr.mxu0 0.0
    %67 = vmatpush1.msra.mxu0 %v53
    %68 = vmatprep.subr.mxu0 0.0
    %69 = vmatpush1.msra.mxu0 %v52
    %70 = vmatprep.subr.mxu0 0.0
    %71 = vmatpush1.msra.mxu0 %v51
    %72 = vmatprep.subr.mxu0 0.0
    %73 = vmatpush1.msra.mxu0 %v50
    %74 = vmatprep.subr.mxu0 0.0
    %75 = vmatpush1.msra.mxu0 %v49
    %76 = vmatprep.subr.mxu0 0.0
    %77 = vmatpush1.msra.mxu0 %v48
    %78 = vmatprep.subr.mxu0 0.0
    %79 = vmatpush1.msra.mxu0 %v47
    %80 = vmatprep.subr.mxu0 0.0
    %81 = vmatpush1.msra.mxu0 %v46
    %82 = vmatprep.subr.mxu0 0.0
    %83 = vmatpush1.msra.mxu0 %v45
    %84 = vmatprep.subr.mxu0 0.0
    %85 = vmatpush1.msra.mxu0 %v44
    %86 = vmatprep.subr.mxu0 0.0
    %87 = vmatpush1.msra.mxu0 %v43
    %88 = vmatprep.subr.mxu0 0.0
    %89 = vmatpush1.msra.mxu0 %v42
    %90 = vmatprep.subr.mxu0 0.0
    %91 = vmatpush2.msra.mxu0 0.0
    %92 = vmatprep.subr.mxu0 0.0
    %93 = vmatpush2.msra.mxu0 0.0
    %94 = vmatprep.subr.mxu0 0.0
    %95 = vmatpush2.msra.mxu0 0.0
    %96 = vmatprep.subr.mxu0 0.0
    %97 = vmatpush2.msra.mxu0 0.0
    %98 = vmatprep.subr.mxu0 0.0
    %99 = vmatpush2.msra.mxu0 0.0
    %100 = vmatprep.subr.mxu0 0.0
    %101 = vmatpush2.msra.mxu0 0.0
    %102 = vmatprep.subr.mxu0 0.0
    %103 = vmatpush2.msra.mxu0 0.0
    %104 = vmatprep.subr.mxu0 0.0
    %105 = vmatpush2.msra.mxu0 0.0
    %106 = vmatprep.subr.mxu0 0.0
    %107 = vmatpush2.msra.mxu0 0.0
    %108 = vmatprep.subr.mxu0 0.0
    %109 = vmatpush2.msra.mxu0 0.0
    %110 = vmatprep.subr.mxu0 0.0
    %111 = vmatpush2.msra.mxu0 0.0
    %112 = vmatprep.subr.mxu0 0.0
    %113 = vmatpush2.msra.mxu0 0.0
    %114 = vmatprep.subr.mxu0 0.0
    %115 = vmatpush2.msra.mxu0 0.0
    %116 = vmatprep.subr.mxu0 0.0
    %117 = vmatpush2.msra.mxu0 0.0
    %118 = vmatprep.subr.mxu0 0.0
    %119 = vmatpush2.msra.mxu0 0.0
    %120 = vmatprep.subr.mxu0 0.0
    %121 = vmatpush2.msra.mxu0 0.0
    %122 = vmatprep.mubr.f32.mxu0 0.0
    %123 = vmatmul.mubr.f32.gmra.mxu0 %v41
    %v124 = vpop.f32.mrf.mxu0
    %v125 = vadd.f32 0.0, %v124
    %v126 = vpop.f32.mrf.mxu0
    %127 = vdwg.mxu0
    %p128 = scmp.eq.s32.totalorder 0, 0
    // Predicated region
    $region22: #{tpu_custom_call.1} parent=1 // pred_check
      %p129 = pneg %p128
    $region23: #{tpu_custom_call.1} parent=1 // pred_check_branch
      %131 = sbr.rel (%p129) target = $region25
    $region24: #{tpu_custom_call.1} parent=1 // pred_region
      %132 = vst [vmem:[#allocation7] sm:$0xff] %v125
    $region25: #{tpu_custom_call.1} parent=1 // pred_fallthru
      _
    %p133 = scmp.ne.s32.totalorder 0, 0
    // Predicated region
    $region26: #{tpu_custom_call.1} parent=1 // pred_check
      %p134 = pneg %p133
    $region27: #{tpu_custom_call.1} parent=1 // pred_check_branch
      %136 = sbr.rel (%p134) target = $region29
    $region28: #{tpu_custom_call.1} parent=1 // pred_region
      %v137 = vld [vmem:[#allocation7] sm:$0xff]
      %v138 = vadd.f32 %v137, %v125
      %139 = vst [vmem:[#allocation7] sm:$0xff] %v138
    $region29: #{tpu_custom_call.1} parent=1 // pred_fallthru
      _
    // Predicated region
    $region30: #{tpu_custom_call.1} parent=1 // pred_check
      %p140 = pneg %p128
    $region31: #{tpu_custom_call.1} parent=1 // pred_check_branch
      %142 = sbr.rel (%p140) target = $region33
    $region32: #{tpu_custom_call.1} parent=1 // pred_region
      %v143 = vld [vmem:[%s2] sm:$0x3]
      %v144 = vld [vmem:[#allocation7] sm:$0xff]
      %v145 = vlaneseq
      %v146 = vshrl.u32 %v145, 7
      %v147 = vsub.s32 0, %v146
      %v148 = vrot.slane %v143, %v147
      %v149 = vmul.f32 %v144, %v148
      %v150 = vlaneseq
      %v151 = vshrl.u32 %v150, 7
      %v152 = vsub.s32 1, %v151
      %v153 = vrot.slane %v143, %v152
      %v154 = vadd.f32 %v149, %v153
      %155 = vst [vmem:[#allocation7] sm:$0xff] %v154
    $region33: #{tpu_custom_call.1} parent=1 // pred_fallthru
      _
    // Predicated region
    $region34: #{tpu_custom_call.1} parent=1 // pred_check
      _
    $region35: #{tpu_custom_call.1} parent=1 // pred_check_branch
      %157 = sbr.rel (0) target = $region37
    $region36: #{tpu_custom_call.1} parent=1 // pred_region
      %s159 = ssub.s32 128, 128
      %160 = vsyncadd [#allocation4], %s159
      %s162 = sshll.u32 [#allocation7], 4
      %s163 = int_to_ptr.vmem [resolvable:$true] %s162
      %165 = dma.vmem_to_hbm [thread:$0]  %s163, 128, %s3, [#allocation4]
    $region37: #{tpu_custom_call.1} parent=1 // pred_fallthru
      _
    // Predicated region
    $region38: #{tpu_custom_call.1} parent=1 // pred_check
      _
    $region39: #{tpu_custom_call.1} parent=1 // pred_check_branch
      %167 = sbr.rel (0) target = $region41
    $region40: #{tpu_custom_call.1} parent=1 // pred_region
      %168 = dma.done [#allocation4], 128
    $region41: #{tpu_custom_call.1} parent=1 // pred_fallthru
      _
    %169 = vsyncpa [#allocation3], 1
    %170 = vsyncpa [#allocation6], 1
    %171 = vsyncpa [#allocation4], 1

</llo_original>
